<compile_context>
chip_gen: v5e
topology: v5e:2x2
jax: 0.10.0
libtpu: 0.0.40
codegen_flags: <defaults>
</compile_context>

<pallas_src>
import jax
import jax.numpy as jnp
from jax.experimental import pallas as pl
from jax.experimental.pallas import tpu as pltpu


def able_kernel(x_ref,
                wz_ref, bz_ref,
                w2_ref, b2_ref,
                w3_ref, b3_ref,
                out_ref):
    # x tile: (1, C, tm) with pixels on the lane axis; drop the leading dim.
    x = x_ref[0]                                     # (C, tm), bf16 or f32
    N = x.shape[0]
    q = w3_ref.shape[0]
    cdt = wz_ref.dtype                               # MXU operand dtype

    # Fused matmul: rows [0, N) = layer-1 pre-activation, rows [N, N+q+1) = z.
    hz = jnp.dot(wz_ref[...], x, preferred_element_type=jnp.float32) + bz_ref[...]
    h = jnp.maximum(hz[:N], 0.0).astype(cdt)         # (N, tm) layer-1 activations
    z = hz[N:]                                       # (q+1, tm) f32: [W4f@x ; b4@x]

    # Layer 2: folded Linear(2N, N//4) + ReLU.
    h = jnp.dot(w2_ref[...], h, preferred_element_type=jnp.float32) + b2_ref[...]
    h = jnp.maximum(h, 0.0).astype(cdt)              # (q, tm)

    # Layer 3: folded Linear(N//2, N//4) + ReLU.
    h = jnp.dot(w3_ref[...], h, preferred_element_type=jnp.float32) + b3_ref[...]
    h = jnp.maximum(h, 0.0)                          # (q, tm), f32

    # Epilogue (z-rewrite): out = sum_k h3[k] * (W4f@x)[k] + b4@x.
    out = jnp.sum(h * z[:q], axis=0, keepdims=True) + z[q:q + 1]   # (1, tm)
    out_ref[...] = out[None]                         # (1, 1, tm) lane-dense store


def able_forward(x_nchw, params, *, tm=None, compute_dtype=jnp.bfloat16):
    """x_nchw: (B, C, H, W). Returns (B, H, W) float32.

    compute_dtype controls the x HBM stream, the weight storage and the
    inter-layer activation dtype fed to the MXU (accumulation is always f32).
    """
    B, C, H, W = x_nchw.shape
    N = C
    q = N // 4
    HW = H * W

    # ---- pixel tile selection -------------------------------------------
    if tm is None:
        cap = 8192                                   # amortize ~0.35us/grid-step
        lanes = 128 * pl.cdiv(HW, 128)
        n_steps = max(1, pl.cdiv(lanes, cap))
        if B == 1:
            n_steps = max(n_steps, 2)                # keep >=2 steps for v7x megacore
        tm = 128 * pl.cdiv(HW, 128 * n_steps)
    else:
        tm = 128 * pl.cdiv(tm, 128)
    HW_pad = tm * pl.cdiv(HW, tm)

    # Free reshape, NO transpose: pixels land on the lane axis.
    x_flat = x_nchw.reshape(B, C, HW).astype(compute_dtype)
    if HW_pad != HW:
        # Zero padding is exact: padded pixels give x=0 -> z=0 -> output 0,
        # and are sliced off below.
        x_flat = jnp.pad(x_flat, ((0, 0), (0, 0), (0, HW_pad - HW)))

    # ---- weight prep ------------------------------------------------------
    (w1, b1), (w2, b2), (w3, b3), (w4, b4) = [
        (jnp.asarray(w, jnp.float32), jnp.asarray(b, jnp.float32))
        for (w, b) in params
    ]
    # Fold the Antirectifier (concat([relu, -relu]) @ W == relu @ (W_top - W_bot))
    # and pre-transpose so the kernel computes W^T @ x_tile (pixels on lanes).
    w1t = w1.T                                       # (N, N)
    w2t = (w2[:N] - w2[N:]).T                        # (q, N)
    w3t = (w3[:q] - w3[q:]).T                        # (q, q)
    w4f = w4[:q] - w4[q:]                            # (q, N) -> z rows
    # Stack layer-1 weight with the z-weight: one matmul consumes x per tile.
    wz = jnp.concatenate([w1t, w4f, b4.reshape(1, N)], axis=0)           # (N+q+1, N)
    bz = jnp.concatenate([b1.reshape(-1, 1),
                          jnp.zeros((q + 1, 1), jnp.float32)], axis=0)   # (N+q+1, 1)

    wz = wz.astype(compute_dtype)
    w2t = w2t.astype(compute_dtype)
    w3t = w3t.astype(compute_dtype)
    b2t = b2.reshape(-1, 1)                          # biases stay f32
    b3t = b3.reshape(-1, 1)
    weights = (wz, bz, w2t, b2t, w3t, b3t)
    bytes_w = sum(int(a.size) * jnp.dtype(a.dtype).itemsize for a in weights)

    def const_spec(arr):
        # Constant index map -> DMA'd once.  (pipeline_mode=pl.Buffered(1)
        # would single-buffer these; negligible saving at this N, so default.)
        return pl.BlockSpec(arr.shape, lambda b, p: (0, 0))

    # ---- cost hint / VMEM budget ------------------------------------------
    itemsize = jnp.dtype(compute_dtype).itemsize
    rows = B * HW_pad
    mac = C * (N + q + 1) + N * q + q * q
    cost = pl.CostEstimate(flops=int(2 * rows * mac + 4 * rows * q),
                           transcendentals=0,
                           bytes_accessed=int(rows * C * itemsize + rows * 4 + bytes_w))

    est_vmem = (2 * C * tm * itemsize                # double-buffered x tile
                + 2 * tm * 4                         # double-buffered out tile
                + 2 * bytes_w                        # resident weights
                + 6 * (N + q + 1) * tm * 4)          # f32 intermediates headroom
    vmem_limit = None
    if est_vmem > 8 * 1024 * 1024:                   # v5e default scoped limit = 16 MiB
        vmem_limit = int(min(max(2 * est_vmem, 32 * 1024 * 1024),
                             48 * 1024 * 1024))      # stays under v7x's 64 MiB

    out = pl.pallas_call(
        able_kernel,
        out_shape=jax.ShapeDtypeStruct((B, 1, HW_pad), jnp.float32),
        grid_spec=pl.GridSpec(
            grid=(B, HW_pad // tm),
            in_specs=[
                pl.BlockSpec((1, C, tm), lambda b, p: (b, 0, p)),
                const_spec(wz), const_spec(bz),
                const_spec(w2t), const_spec(b2t),
                const_spec(w3t), const_spec(b3t),
            ],
            out_specs=pl.BlockSpec((1, 1, tm), lambda b, p: (b, 0, p)),
        ),
        compiler_params=pltpu.CompilerParams(
            dimension_semantics=("parallel", "parallel"),
            vmem_limit_bytes=vmem_limit),
        cost_estimate=cost,
    )(x_flat, *weights)

    return out[:, 0, :HW].reshape(B, H, W)


def able_reference(x_nchw, params):
    """Pure-JAX reference mirroring the PyTorch forward (dropout = identity)."""
    x = jnp.transpose(x_nchw, (0, 2, 3, 1)).astype(jnp.float32)   # NHWC
    (w1, b1), (w2, b2), (w3, b3), (w4, b4) = params

    def anti(h):
        r = jnp.maximum(h, 0.0)
        return jnp.concatenate([r, -r], axis=-1)

    h = anti(x @ w1 + b1[0])
    h = anti(h @ w2 + b2[0])
    h = anti(h @ w3 + b3[0])
    wts = h @ w4 + b4[0]
    return jnp.sum(wts * x, axis=-1)


def init_params(key, N):
    """Deterministic init. Weights stored as (in, out), biases as (1, out)."""
    dims = [
        (N, N),            # Linear(N, N)           (first layer, fixed reading)
        (2 * N, N // 4),   # Linear(2N, N//4)
        (N // 2, N // 4),  # Linear(N//2, N//4)
        (N // 2, N),       # Linear(N//2, N)
    ]
    params = []
    for (din, dout) in dims:
        key, kw, kb = jax.random.split(key, 3)
        bound = 1.0 / (din ** 0.5)
        w = jax.random.uniform(kw, (din, dout), jnp.float32, -bound, bound)
        b = jax.random.uniform(kb, (1, dout), jnp.float32, -bound, bound)
        params.append((w, b))
    return params


if __name__ == "__main__":
    key = jax.random.PRNGKey(0)
    B, N, H, W = 2, 32, 16, 16                # input_shape = (B, N, H, W)
    kx, kp = jax.random.split(key)
    x = jax.random.normal(kx, (B, N, H, W), jnp.float32)
    params = init_params(kp, N)

    y_ref = able_reference(x, params)

    # Exact-semantics path (f32 storage + f32 MXU operands): tight tolerance.
    y_f32 = able_forward(x, params, compute_dtype=jnp.float32)
    jax.block_until_ready(y_f32)
    assert y_f32.shape == (B, H, W)
    err_f32 = float(jnp.max(jnp.abs(y_f32 - y_ref)))
    assert jnp.allclose(y_f32, y_ref, atol=1e-3, rtol=1e-3), err_f32

    # Default fast path (bf16 x stream / bf16 MXU operands, f32 accumulation):
    # bf16-level tolerance.
    y = able_forward(x, params)
    jax.block_until_ready(y)
    assert y.shape == (B, H, W)
    err_bf16 = float(jnp.max(jnp.abs(y - y_ref)))
    assert jnp.allclose(y, y_ref, atol=1e-1, rtol=1e-1), err_bf16

    print("KERNEL_OK")
</pallas_src>

<mosaic_0001>
module attributes {stable_mosaic.version = 11 : i64} {
  func.func @able_kernel(%arg0: i32, %arg1: i32, %arg2: memref<1x32x256xf32, #tpu.memory_space<vmem>>, %arg3: memref<41x32xf32, #tpu.memory_space<vmem>>, %arg4: memref<41x1xf32, #tpu.memory_space<vmem>>, %arg5: memref<8x32xf32, #tpu.memory_space<vmem>>, %arg6: memref<8x1xf32, #tpu.memory_space<vmem>>, %arg7: memref<8x8xf32, #tpu.memory_space<vmem>>, %arg8: memref<8x1xf32, #tpu.memory_space<vmem>>, %arg9: memref<1x1x256xf32, #tpu.memory_space<vmem>>) attributes {dimension_semantics = [#tpu.dimension_semantics<parallel>, #tpu.dimension_semantics<parallel>], iteration_bounds = array<i64: 2, 1>, scalar_prefetch = 0 : i64, scratch_operands = 0 : i64, tpu.core_type = #tpu.core_type<tc>, window_params = [{transform_indices = @transform_0, window_bounds = array<i64: 1, 32, 256>}, {pipeline_mode = #tpu.pipeline_mode<synchronous>, transform_indices = @transform_1, window_bounds = array<i64: 41, 32>}, {pipeline_mode = #tpu.pipeline_mode<synchronous>, transform_indices = @transform_2, window_bounds = array<i64: 41, 1>}, {pipeline_mode = #tpu.pipeline_mode<synchronous>, transform_indices = @transform_3, window_bounds = array<i64: 8, 32>}, {pipeline_mode = #tpu.pipeline_mode<synchronous>, transform_indices = @transform_4, window_bounds = array<i64: 8, 1>}, {pipeline_mode = #tpu.pipeline_mode<synchronous>, transform_indices = @transform_5, window_bounds = array<i64: 8, 8>}, {pipeline_mode = #tpu.pipeline_mode<synchronous>, transform_indices = @transform_6, window_bounds = array<i64: 8, 1>}, {transform_indices = @transform_7, window_bounds = array<i64: 1, 1, 256>}]} {
    %c0 = arith.constant 0 : index
    %c0_0 = arith.constant 0 : index
    %c0_1 = arith.constant 0 : index
    %0 = vector.load %arg2[%c0, %c0_0, %c0_1] : memref<1x32x256xf32, #tpu.memory_space<vmem>>, vector<1x32x256xf32>
    %1 = vector.shape_cast %0 : vector<1x32x256xf32> to vector<32x256xf32>
    %c0_2 = arith.constant 0 : index
    %c0_3 = arith.constant 0 : index
    %2 = vector.load %arg3[%c0_2, %c0_3] : memref<41x32xf32, #tpu.memory_space<vmem>>, vector<41x32xf32>
    %cst = arith.constant dense<0.000000e+00> : vector<41x256xf32>
    %3 = tpu.matmul %2, %1, %cst {dimension_numbers = #tpu.dot_dimension_numbers<[1], [0], [0], [1], [0, 0, 1, 1], [], []>} : vector<41x32xf32>, vector<32x256xf32>, vector<41x256xf32> -> vector<41x256xf32>
    %c0_4 = arith.constant 0 : index
    %c0_5 = arith.constant 0 : index
    %4 = vector.load %arg4[%c0_4, %c0_5] : memref<41x1xf32, #tpu.memory_space<vmem>>, vector<41x1xf32>
    %5 = vector.broadcast %4 : vector<41x1xf32> to vector<41x256xf32>
    %6 = arith.addf %3, %5 : vector<41x256xf32>
    %7 = vector.extract_strided_slice %6 {offsets = [0, 0], sizes = [32, 256], strides = [1, 1]} : vector<41x256xf32> to vector<32x256xf32>
    %cst_6 = arith.constant 0.000000e+00 : f32
    %8 = vector.broadcast %cst_6 : f32 to vector<32x256xf32>
    %9 = arith.maximumf %7, %8 : vector<32x256xf32>
    %10 = vector.extract_strided_slice %6 {offsets = [32, 0], sizes = [9, 256], strides = [1, 1]} : vector<41x256xf32> to vector<9x256xf32>
    %c0_7 = arith.constant 0 : index
    %c0_8 = arith.constant 0 : index
    %11 = vector.load %arg5[%c0_7, %c0_8] : memref<8x32xf32, #tpu.memory_space<vmem>>, vector<8x32xf32>
    %cst_9 = arith.constant dense<0.000000e+00> : vector<8x256xf32>
    %12 = tpu.matmul %11, %9, %cst_9 {dimension_numbers = #tpu.dot_dimension_numbers<[1], [0], [0], [1], [0, 0, 1, 1], [], []>} : vector<8x32xf32>, vector<32x256xf32>, vector<8x256xf32> -> vector<8x256xf32>
    %c0_10 = arith.constant 0 : index
    %c0_11 = arith.constant 0 : index
    %13 = vector.load %arg6[%c0_10, %c0_11] : memref<8x1xf32, #tpu.memory_space<vmem>>, vector<8x1xf32>
    %14 = vector.broadcast %13 : vector<8x1xf32> to vector<8x256xf32>
    %15 = arith.addf %12, %14 : vector<8x256xf32>
    %cst_12 = arith.constant 0.000000e+00 : f32
    %16 = vector.broadcast %cst_12 : f32 to vector<8x256xf32>
    %17 = arith.maximumf %15, %16 : vector<8x256xf32>
    %c0_13 = arith.constant 0 : index
    %c0_14 = arith.constant 0 : index
    %18 = vector.load %arg7[%c0_13, %c0_14] : memref<8x8xf32, #tpu.memory_space<vmem>>, vector<8x8xf32>
    %cst_15 = arith.constant dense<0.000000e+00> : vector<8x256xf32>
    %19 = tpu.matmul %18, %17, %cst_15 {dimension_numbers = #tpu.dot_dimension_numbers<[1], [0], [0], [1], [0, 0, 1, 1], [], []>} : vector<8x8xf32>, vector<8x256xf32>, vector<8x256xf32> -> vector<8x256xf32>
    %c0_16 = arith.constant 0 : index
    %c0_17 = arith.constant 0 : index
    %20 = vector.load %arg8[%c0_16, %c0_17] : memref<8x1xf32, #tpu.memory_space<vmem>>, vector<8x1xf32>
    %21 = vector.broadcast %20 : vector<8x1xf32> to vector<8x256xf32>
    %22 = arith.addf %19, %21 : vector<8x256xf32>
    %cst_18 = arith.constant 0.000000e+00 : f32
    %23 = vector.broadcast %cst_18 : f32 to vector<8x256xf32>
    %24 = arith.maximumf %22, %23 : vector<8x256xf32>
    %25 = vector.extract_strided_slice %10 {offsets = [0, 0], sizes = [8, 256], strides = [1, 1]} : vector<9x256xf32> to vector<8x256xf32>
    %26 = arith.mulf %24, %25 : vector<8x256xf32>
    %cst_19 = arith.constant dense<0.000000e+00> : vector<256xf32>
    %27 = vector.multi_reduction <add>, %26, %cst_19 [0] : vector<8x256xf32> to vector<256xf32>
    %28 = vector.shape_cast %27 : vector<256xf32> to vector<1x256xf32>
    %29 = vector.extract_strided_slice %10 {offsets = [8, 0], sizes = [1, 256], strides = [1, 1]} : vector<9x256xf32> to vector<1x256xf32>
    %30 = arith.addf %28, %29 : vector<1x256xf32>
    %31 = vector.shape_cast %30 : vector<1x256xf32> to vector<1x1x256xf32>
    %c0_20 = arith.constant 0 : index
    %c0_21 = arith.constant 0 : index
    %c0_22 = arith.constant 0 : index
    %32 = vector.load %arg9[%c0_20, %c0_21, %c0_22] : memref<1x1x256xf32, #tpu.memory_space<vmem>>, vector<1x1x256xf32>
    tpu.vector_store %arg9[%c0_20, %c0_21, %c0_22], %31 {strides = array<i32>} : memref<1x1x256xf32, #tpu.memory_space<vmem>>, vector<1x1x256xf32>,
    return
  }
  func.func @transform_0(%arg0: i32, %arg1: i32) -> (i32, i32, i32) {
    %c0_i32 = arith.constant 0 : i32
    %c0_i32_0 = arith.constant 0 : i32
    return %arg0, %c0_i32, %arg1 : i32, i32, i32
  }
  func.func @transform_1(%arg0: i32, %arg1: i32) -> (i32, i32) {
    %c0_i32 = arith.constant 0 : i32
    %c0_i32_0 = arith.constant 0 : i32
    %c0_i32_1 = arith.constant 0 : i32
    return %c0_i32, %c0_i32_0 : i32, i32
  }
  func.func @transform_2(%arg0: i32, %arg1: i32) -> (i32, i32) {
    %c0_i32 = arith.constant 0 : i32
    %c0_i32_0 = arith.constant 0 : i32
    %c0_i32_1 = arith.constant 0 : i32
    return %c0_i32, %c0_i32_0 : i32, i32
  }
  func.func @transform_3(%arg0: i32, %arg1: i32) -> (i32, i32) {
    %c0_i32 = arith.constant 0 : i32
    %c0_i32_0 = arith.constant 0 : i32
    %c0_i32_1 = arith.constant 0 : i32
    return %c0_i32, %c0_i32_0 : i32, i32
  }
  func.func @transform_4(%arg0: i32, %arg1: i32) -> (i32, i32) {
    %c0_i32 = arith.constant 0 : i32
    %c0_i32_0 = arith.constant 0 : i32
    %c0_i32_1 = arith.constant 0 : i32
    return %c0_i32, %c0_i32_0 : i32, i32
  }
  func.func @transform_5(%arg0: i32, %arg1: i32) -> (i32, i32) {
    %c0_i32 = arith.constant 0 : i32
    %c0_i32_0 = arith.constant 0 : i32
    %c0_i32_1 = arith.constant 0 : i32
    return %c0_i32, %c0_i32_0 : i32, i32
  }
  func.func @transform_6(%arg0: i32, %arg1: i32) -> (i32, i32) {
    %c0_i32 = arith.constant 0 : i32
    %c0_i32_0 = arith.constant 0 : i32
    %c0_i32_1 = arith.constant 0 : i32
    return %c0_i32, %c0_i32_0 : i32, i32
  }
  func.func @transform_7(%arg0: i32, %arg1: i32) -> (i32, i32, i32) {
    %c0_i32 = arith.constant 0 : i32
    %c0_i32_0 = arith.constant 0 : i32
    return %arg0, %c0_i32, %arg1 : i32, i32, i32
  }
}

</mosaic_0001>

<llo_original>
// kernel: tpu_custom_call.1
$region0: #{tpu_custom_call.1}
  #allocation0 [shape = 'u32[]', space=smem, size = 0x4, offset = 0x4, fixed_abs, tag = 'smem constant byte address 0x4 - core index']
  #allocation1 [shape = 'u32[72,128]{1,0:T(1,128)}', space=vmem, size = 0x9000, scoped, tag = 'internal scratch']
  %s0 = inlined_call_operand.vmem [shape: f32[2,32,256], index: 0, kind: input, shape index: {}]
  %s1 = inlined_call_operand.vmem [shape: f32[41,32], index: 1, kind: input, shape index: {}]
  %s2 = inlined_call_operand.vmem [shape: f32[41,1], index: 2, kind: input, shape index: {}]
  %s3 = inlined_call_operand.vmem [shape: f32[8,32], index: 3, kind: input, shape index: {}]
  %s4 = inlined_call_operand.vmem [shape: f32[8,1], index: 4, kind: input, shape index: {}]
  %s5 = inlined_call_operand.vmem [shape: f32[8,8], index: 5, kind: input, shape index: {}]
  %s6 = inlined_call_operand.vmem [shape: f32[8,1], index: 6, kind: input, shape index: {}]
  %s7 = inlined_call_operand.hbm [shape: f32[2,1,256], index: 7, kind: output, shape index: {}]
  %s8 = sld [smem:[#allocation0]]
  $region61: #{tpu_custom_call.1} parent=0
    _
  %s10 = ssub.s32 1, %s8
  %s11 = scalar_select 0, %s10, %s8
  $region1: #{tpu_custom_call.1} parent=0
    #allocation2 [shape = 'u8[2048]{0}', space=vmem, size = 0x800, scoped, tag = 'output window, operand 0']
    #allocation3 [shape = 's32[2]{0}', space=sflag, size = 0x8, scoped, tag = 'scoped memory for tpu_custom_call.1']
    %12 = vsyncpa [#allocation3], 0
    %s13 = scalar_lea.sflag [#allocation3], 1
    %14 = vsyncpa %s13, 0
    loop: start=0, step=1, limit=4
    $region2: #{tpu_custom_call.1} parent=1 // loop_pre_header
      _
    $region3: #{tpu_custom_call.1} parent=1 // loop_header
      %s16 = sphi 0, %s20
      %p17 = scmp.ge.s32.totalorder %s16, 4
      %s23 = sphi 0, %s35
      %s24 = sphi 0, %s31
      %s25 = sphi 0, %s23
      %s26 = sphi 0, %s24
      %s27 = sphi 0, %s25
      %s28 = sphi 0, %s26
      %s40 = sphi 0, %s42
      %s43 = sphi 0, %s40
      %s44 = sphi 0, %s43
      %s60 = sphi 0, %s44
      %s64 = sphi 0, %s64
      %s66 = sphi 0, %s64
      %s67 = sphi 0, %s66
      %s81 = sphi 0, %s67
      %s85 = sphi 0, %s85
      %s87 = sphi 0, %s85
      %s88 = sphi 0, %s87
      %s102 = sphi 0, %s88
      %s106 = sphi 0, %s106
      %s108 = sphi 0, %s106
      %s109 = sphi 0, %s108
      %s123 = sphi 0, %s109
      %s127 = sphi 0, %s127
      %s129 = sphi 0, %s127
      %s130 = sphi 0, %s129
      %s144 = sphi 0, %s130
      %s148 = sphi 0, %s148
      %s150 = sphi 0, %s148
      %s151 = sphi 0, %s150
      %s165 = sphi 0, %s151
      %s169 = sphi 0, %s169
      %s171 = sphi 0, %s169
      %s172 = sphi 0, %s171
      %s186 = sphi 0, %s172
      %s194 = sphi 0, %s196
      %s197 = sphi 0, %s194
      %s198 = sphi 0, %s197
      %s214 = sphi 0, %s198
    $region4: #{tpu_custom_call.1} parent=1 // loop_header_branch
      %19 = sbr.rel (%p17) target = $region8
    $region5: #{tpu_custom_call.1} parent=1 // loop_body
      %s21 = ssub.s32 %s16, 1
      %s22 = ssub.s32 %s16, 2
      %s29 = sadd.s32 1, %s24
      %p30 = scmp.ge.s32.totalorder %s29, 1
      %s31 = scalar_select %p30, 0, %s29
      %s32 = sadd.s32 1, %s23
      %s33 = scalar_select %p30, %s32, %s23
      %p34 = scmp.ge.s32.totalorder %s33, 2
      %s35 = scalar_select %p34, 0, %s33
      %s36 = ssub.s32 %s23, %s35
      %s37 = ssub.s32 %s24, %s31
      %s38 = sor.u32 %s36, %s37
      %p39 = scmp.eq.s32.totalorder %s38, 0
      %s41 = sadd.s32 %s40, 1
      %s42 = scalar_select %p39, %s40, %s41
      %p45 = pneg %p39
      %p46 = scmp.eq.s32.totalorder %s16, 1
      %p47 = por %p45, %p46
      %p48 = scmp.ne.s32.totalorder %s40, %s43
      %p49 = scmp.eq.s32.totalorder %s16, 0
      %p50 = por %p48, %p49
      %p51 = scmp.ne.s32.totalorder %s40, %s43
      %p52 = scmp.eq.s32.totalorder %s21, 1
      %p53 = por %p51, %p52
      %p54 = scmp.ne.s32.totalorder %s43, %s44
      %p55 = scmp.eq.s32.totalorder %s21, 0
      %p56 = por %p54, %p55
      %p57 = scmp.ne.s32.totalorder %s43, %s44
      %p58 = scmp.eq.s32.totalorder %s22, 1
      %p59 = por %p57, %p58
      %p61 = scmp.ne.s32.totalorder %s44, %s60
      %p62 = scmp.eq.s32.totalorder %s22, 0
      %p63 = por %p61, %p62
      %s65 = sadd.s32 %s64, 1
      %p68 = scmp.eq.s32.totalorder %s16, 1
      %p69 = scmp.ne.s32.totalorder %s64, %s66
      %p70 = scmp.eq.s32.totalorder %s16, 0
      %p71 = por %p69, %p70
      %p72 = scmp.ne.s32.totalorder %s64, %s66
      %p73 = scmp.eq.s32.totalorder %s21, 1
      %p74 = por %p72, %p73
      %p75 = scmp.ne.s32.totalorder %s66, %s67
      %p76 = scmp.eq.s32.totalorder %s21, 0
      %p77 = por %p75, %p76
      %p78 = scmp.ne.s32.totalorder %s66, %s67
      %p79 = scmp.eq.s32.totalorder %s22, 1
      %p80 = por %p78, %p79
      %p82 = scmp.ne.s32.totalorder %s67, %s81
      %p83 = scmp.eq.s32.totalorder %s22, 0
      %p84 = por %p82, %p83
      %s86 = sadd.s32 %s85, 1
      %p89 = scmp.eq.s32.totalorder %s16, 1
      %p90 = scmp.ne.s32.totalorder %s85, %s87
      %p91 = scmp.eq.s32.totalorder %s16, 0
      %p92 = por %p90, %p91
      %p93 = scmp.ne.s32.totalorder %s85, %s87
      %p94 = scmp.eq.s32.totalorder %s21, 1
      %p95 = por %p93, %p94
      %p96 = scmp.ne.s32.totalorder %s87, %s88
      %p97 = scmp.eq.s32.totalorder %s21, 0
      %p98 = por %p96, %p97
      %p99 = scmp.ne.s32.totalorder %s87, %s88
      %p100 = scmp.eq.s32.totalorder %s22, 1
      %p101 = por %p99, %p100
      %p103 = scmp.ne.s32.totalorder %s88, %s102
      %p104 = scmp.eq.s32.totalorder %s22, 0
      %p105 = por %p103, %p104
      %s107 = sadd.s32 %s106, 1
      %p110 = scmp.eq.s32.totalorder %s16, 1
      %p111 = scmp.ne.s32.totalorder %s106, %s108
      %p112 = scmp.eq.s32.totalorder %s16, 0
      %p113 = por %p111, %p112
      %p114 = scmp.ne.s32.totalorder %s106, %s108
      %p115 = scmp.eq.s32.totalorder %s21, 1
      %p116 = por %p114, %p115
      %p117 = scmp.ne.s32.totalorder %s108, %s109
      %p118 = scmp.eq.s32.totalorder %s21, 0
      %p119 = por %p117, %p118
      %p120 = scmp.ne.s32.totalorder %s108, %s109
      %p121 = scmp.eq.s32.totalorder %s22, 1
      %p122 = por %p120, %p121
      %p124 = scmp.ne.s32.totalorder %s109, %s123
      %p125 = scmp.eq.s32.totalorder %s22, 0
      %p126 = por %p124, %p125
      %s128 = sadd.s32 %s127, 1
      %p131 = scmp.eq.s32.totalorder %s16, 1
      %p132 = scmp.ne.s32.totalorder %s127, %s129
      %p133 = scmp.eq.s32.totalorder %s16, 0
      %p134 = por %p132, %p133
      %p135 = scmp.ne.s32.totalorder %s127, %s129
      %p136 = scmp.eq.s32.totalorder %s21, 1
      %p137 = por %p135, %p136
      %p138 = scmp.ne.s32.totalorder %s129, %s130
      %p139 = scmp.eq.s32.totalorder %s21, 0
      %p140 = por %p138, %p139
      %p141 = scmp.ne.s32.totalorder %s129, %s130
      %p142 = scmp.eq.s32.totalorder %s22, 1
      %p143 = por %p141, %p142
      %p145 = scmp.ne.s32.totalorder %s130, %s144
      %p146 = scmp.eq.s32.totalorder %s22, 0
      %p147 = por %p145, %p146
      %s149 = sadd.s32 %s148, 1
      %p152 = scmp.eq.s32.totalorder %s16, 1
      %p153 = scmp.ne.s32.totalorder %s148, %s150
      %p154 = scmp.eq.s32.totalorder %s16, 0
      %p155 = por %p153, %p154
      %p156 = scmp.ne.s32.totalorder %s148, %s150
      %p157 = scmp.eq.s32.totalorder %s21, 1
      %p158 = por %p156, %p157
      %p159 = scmp.ne.s32.totalorder %s150, %s151
      %p160 = scmp.eq.s32.totalorder %s21, 0
      %p161 = por %p159, %p160
      %p162 = scmp.ne.s32.totalorder %s150, %s151
      %p163 = scmp.eq.s32.totalorder %s22, 1
      %p164 = por %p162, %p163
      %p166 = scmp.ne.s32.totalorder %s151, %s165
      %p167 = scmp.eq.s32.totalorder %s22, 0
      %p168 = por %p166, %p167
      %s170 = sadd.s32 %s169, 1
      %p173 = scmp.eq.s32.totalorder %s16, 1
      %p174 = scmp.ne.s32.totalorder %s169, %s171
      %p175 = scmp.eq.s32.totalorder %s16, 0
      %p176 = por %p174, %p175
      %p177 = scmp.ne.s32.totalorder %s169, %s171
      %p178 = scmp.eq.s32.totalorder %s21, 1
      %p179 = por %p177, %p178
      %p180 = scmp.ne.s32.totalorder %s171, %s172
      %p181 = scmp.eq.s32.totalorder %s21, 0
      %p182 = por %p180, %p181
      %p183 = scmp.ne.s32.totalorder %s171, %s172
      %p184 = scmp.eq.s32.totalorder %s22, 1
      %p185 = por %p183, %p184
      %p187 = scmp.ne.s32.totalorder %s172, %s186
      %p188 = scmp.eq.s32.totalorder %s22, 0
      %p189 = por %p187, %p188
      %s190 = ssub.s32 %s23, %s35
      %s191 = ssub.s32 %s24, %s31
      %s192 = sor.u32 %s190, %s191
      %p193 = scmp.eq.s32.totalorder %s192, 0
      %s195 = sadd.s32 %s194, 1
      %s196 = scalar_select %p193, %s194, %s195
      %p199 = pneg %p193
      %p200 = scmp.eq.s32.totalorder %s16, 1
      %p201 = por %p199, %p200
      %p202 = scmp.ne.s32.totalorder %s194, %s197
      %p203 = scmp.eq.s32.totalorder %s16, 0
      %p204 = por %p202, %p203
      %p205 = scmp.ne.s32.totalorder %s194, %s197
      %p206 = scmp.eq.s32.totalorder %s21, 1
      %p207 = por %p205, %p206
      %p208 = scmp.ne.s32.totalorder %s197, %s198
      %p209 = scmp.eq.s32.totalorder %s21, 0
      %p210 = por %p208, %p209
      %p211 = scmp.ne.s32.totalorder %s197, %s198
      %p212 = scmp.eq.s32.totalorder %s22, 1
      %p213 = por %p211, %p212
      %p215 = scmp.ne.s32.totalorder %s198, %s214
      %p216 = scmp.eq.s32.totalorder %s22, 0
      %p217 = por %p215, %p216
      %p218 = scmp.le.s32.totalorder 1, %s16
      %p219 = scmp.lt.s32.totalorder %s16, 3
      %p220 = pnand %p218, %p219
      %p221 = pneg %p220
      // Predicated region
      $region9: #{tpu_custom_call.1} parent=5 // pred_check
        _
      $region10: #{tpu_custom_call.1} parent=5 // pred_check_branch
        %223 = sbr.rel (%p220) target = $region12
      $region11: #{tpu_custom_call.1} parent=5 // pred_region
        %s224 = ssub.s32 %s16, 1
        // Predicated region
        $region13: #{tpu_custom_call.1} parent=11 // pred_check
          %p225 = pneg %p77
        $region14: #{tpu_custom_call.1} parent=11 // pred_check_branch
          %227 = sbr.rel (%p225) target = $region16
        $region15: #{tpu_custom_call.1} parent=11 // pred_region
          _
        $region16: #{tpu_custom_call.1} parent=11 // pred_fallthru
          _
        // Predicated region
        $region17: #{tpu_custom_call.1} parent=11 // pred_check
          %p228 = pneg %p98
        $region18: #{tpu_custom_call.1} parent=11 // pred_check_branch
          %230 = sbr.rel (%p228) target = $region20
        $region19: #{tpu_custom_call.1} parent=11 // pred_region
          _
        $region20: #{tpu_custom_call.1} parent=11 // pred_fallthru
          _
        // Predicated region
        $region21: #{tpu_custom_call.1} parent=11 // pred_check
          %p231 = pneg %p119
        $region22: #{tpu_custom_call.1} parent=11 // pred_check_branch
          %233 = sbr.rel (%p231) target = $region24
        $region23: #{tpu_custom_call.1} parent=11 // pred_region
          _
        $region24: #{tpu_custom_call.1} parent=11 // pred_fallthru
          _
        // Predicated region
        $region25: #{tpu_custom_call.1} parent=11 // pred_check
          %p234 = pneg %p140
        $region26: #{tpu_custom_call.1} parent=11 // pred_check_branch
          %236 = sbr.rel (%p234) target = $region28
        $region27: #{tpu_custom_call.1} parent=11 // pred_region
          _
        $region28: #{tpu_custom_call.1} parent=11 // pred_fallthru
          _
        // Predicated region
        $region29: #{tpu_custom_call.1} parent=11 // pred_check
          %p237 = pneg %p161
        $region30: #{tpu_custom_call.1} parent=11 // pred_check_branch
          %239 = sbr.rel (%p237) target = $region32
        $region31: #{tpu_custom_call.1} parent=11 // pred_region
          _
        $region32: #{tpu_custom_call.1} parent=11 // pred_fallthru
          _
        // Predicated region
        $region33: #{tpu_custom_call.1} parent=11 // pred_check
          %p240 = pneg %p182
        $region34: #{tpu_custom_call.1} parent=11 // pred_check_branch
          %242 = sbr.rel (%p240) target = $region36
        $region35: #{tpu_custom_call.1} parent=11 // pred_region
          _
        $region36: #{tpu_custom_call.1} parent=11 // pred_fallthru
          _
      $region12: #{tpu_custom_call.1} parent=5 // pred_fallthru
        _
      %p243 = scmp.lt.s32.totalorder %s16, 2
      // Predicated region
      $region37: #{tpu_custom_call.1} parent=5 // pred_check
        %p244 = pneg %p243
      $region38: #{tpu_custom_call.1} parent=5 // pred_check_branch
        %246 = sbr.rel (%p244) target = $region40
      $region39: #{tpu_custom_call.1} parent=5 // pred_region
        // Predicated region
        $region41: #{tpu_custom_call.1} parent=39 // pred_check
          %p247 = pneg %p50
        $region42: #{tpu_custom_call.1} parent=39 // pred_check_branch
          %249 = sbr.rel (%p247) target = $region44
        $region43: #{tpu_custom_call.1} parent=39 // pred_region
          %s250 = smul.u32 2, %s24
          %p251 = scmp.lt.s32.totalorder %s23, 1
          %s252 = scalar_select %p251, %s23, 1
          %p253 = scmp.lt.s32.totalorder %s250, 1
          %s254 = scalar_select %p253, %s250, 1
          %s255 = smul.addr %s252, 8
          %s256 = sadd.s32 %s254, %s255
          %s257 = smul.addr %s256, 8
          %s258 = scalar_lea.vmem %s0, %s257
          %s259 = smul.u32 2, %s24
        $region44: #{tpu_custom_call.1} parent=39 // pred_fallthru
          _
      $region40: #{tpu_custom_call.1} parent=5 // pred_fallthru
        _
      %p260 = scmp.le.s32.totalorder 1, %s16
      %p261 = scmp.lt.s32.totalorder %s16, 3
      %p262 = pnand %p260, %p261
      %p263 = pneg %p262
      // Predicated region
      $region45: #{tpu_custom_call.1} parent=5 // pred_check
        _
      $region46: #{tpu_custom_call.1} parent=5 // pred_check_branch
        %265 = sbr.rel (%p262) target = $region48
      $region47: #{tpu_custom_call.1} parent=5 // pred_region
        %s266 = ssub.s32 %s16, 1
        %s267 = smul.u32 2, %s26
        %p268 = scmp.lt.s32.totalorder %s25, 1
        %s269 = scalar_select %p268, %s25, 1
        %p270 = scmp.lt.s32.totalorder %s267, 1
        %s271 = scalar_select %p270, %s267, 1
        %s272 = smul.addr %s269, 8
        %s273 = sadd.s32 %s271, %s272
        %s274 = smul.addr %s273, 8
        %s275 = scalar_lea.vmem %s0, %s274
        %p276 = pneg %p56
        %p277 = pneg %p53
        %p278 = pneg %p77
        %p279 = pneg %p74
        %p280 = pneg %p98
        %p281 = pneg %p95
        %p282 = pneg %p119
        %p283 = pneg %p116
        %p284 = pneg %p140
        %p285 = pneg %p137
        %p286 = pneg %p161
        %p287 = pneg %p158
        %p288 = pneg %p182
        %p289 = pneg %p179
        %p290 = pneg %p210
        %p291 = pneg %p207
        %s292 = sand.u32 %s197, 1
        %s293 = scalar_lea.sflag [#allocation3], %s292
        %s294 = sand.u32 %s197, 1
        %s295 = smul.addr %s294, 2
        %s296 = scalar_lea.vmem [#allocation2], %s295
        %s297 = smul.u32 2, %s26
        %p298 = scmp.lt.s32.totalorder %s25, 1
        %s299 = scalar_select %p298, %s25, 1
        %p300 = scmp.lt.s32.totalorder %s297, 1
        %s301 = scalar_select %p300, %s297, 1
        %s302 = smul.addr %s299, 8
        %s303 = sadd.s32 %s301, %s302
        %s304 = smul.addr %s303, 8
        %s305 = scalar_lea.vmem %s0, %s304
        %s306 = smul.u32 2, %s26
        %s307 = smul.u32 2, %s26
        %v308 = vld [vmem:[%s305] sm:$0xff]
        %v309 = vld [vmem:[%s305 + $0x8] sm:$0xff]
        %v310 = vld [vmem:[%s305 + $0x10] sm:$0xff]
        %v311 = vld [vmem:[%s305 + $0x18] sm:$0xff]
        %v312 = vld [vmem:[%s305 + $0x20] sm:$0xff]
        %v313 = vld [vmem:[%s305 + $0x28] sm:$0xff]
        %v314 = vld [vmem:[%s305 + $0x30] sm:$0xff]
        %v315 = vld [vmem:[%s305 + $0x38] sm:$0xff]
        %v316 = vld [vmem:[%s1] sm:$0xff]
        %v317 = vld [vmem:[%s1 + $0x8] sm:$0xff]
        %v318 = vld [vmem:[%s1 + $0x10] sm:$0xff]
        %v319 = vld [vmem:[%s1 + $0x18] sm:$0xff]
        %v320 = vld [vmem:[%s1 + $0x20] sm:$0xff]
        %v321 = vld [vmem:[%s1 + $0x28] sm:$0x1]
        %v322 = vld [vmem:[%s2] sm:$0xff]
        %v323 = vld [vmem:[%s2 + $0x8] sm:$0xff]
        %v324 = vld [vmem:[%s2 + $0x10] sm:$0xff]
        %v325 = vld [vmem:[%s2 + $0x18] sm:$0xff]
        %v326 = vld [vmem:[%s2 + $0x20] sm:$0xff]
        %v327 = vld [vmem:[%s2 + $0x28] sm:$0x1]
        %329 = vset.pattern.permute.xlu0 0
        %330 = vperm.xlu0 %329, %v322
        %v331 = vpop.permute.xlu0 %330
        %334 = vset.pattern.permute.xlu0 0
        %335 = vperm.xlu0 %334, %v323
        %v336 = vpop.permute.xlu0 %335
        %339 = vset.pattern.permute.xlu0 0
        %340 = vperm.xlu0 %339, %v324
        %v341 = vpop.permute.xlu0 %340
        %344 = vset.pattern.permute.xlu0 0
        %345 = vperm.xlu0 %344, %v325
        %v346 = vpop.permute.xlu0 %345
        %349 = vset.pattern.permute.xlu0 0
        %350 = vperm.xlu0 %349, %v326
        %v351 = vpop.permute.xlu0 %350
        %354 = vset.pattern.permute.xlu0 0
        %355 = vperm.xlu0 %354, %v327
        %v356 = vpop.permute.xlu0 %355
        %vm358 = vcmask 261120
        %v360 = vsel %vm358, %v316, 0
        %v363 = vsel %vm358, %v317, 0
        %v366 = vsel %vm358, %v318, 0
        %v369 = vsel %vm358, %v319, 0
        %v372 = vsel %vm358, %v320, 0
        %v375 = vsel %vm358, %v321, 0
        %377 = vmatpush.msra.mxu0 0.0
        %378 = vmatpush.msra.mxu0 0.0
        %379 = vmatpush.msra.mxu0 0.0
        %380 = vmatpush.msra.mxu0 0.0
        %381 = vmatpush.msra.mxu0 0.0
        %382 = vmatpush.msra.mxu0 0.0
        %383 = vmatpush.msra.mxu0 0.0
        %384 = vmatpush.msra.mxu0 0.0
        %385 = vmatpush.msra.mxu0 0.0
        %386 = vmatpush.msra.mxu0 0.0
        %387 = vmatpush.msra.mxu0 0.0
        %388 = vmatpush.msra.mxu0 0.0
        %389 = vmatpush.msra.mxu0 %v314
        %390 = vmatpush.msra.mxu0 %v312
        %391 = vmatpush.msra.mxu0 %v310
        %392 = vmatpush.msra.mxu0 %v308
        %393 = vmatmul.f32.gmra.mxu0 %v360
        %v394 = vpop.f32.mrf.mxu0
        %v395 = vadd.f32 %v331, %v394
        %396 = vmatmul.f32.gmra.mxu0 %v363
        %v397 = vpop.f32.mrf.mxu0
        %v398 = vadd.f32 %v336, %v397
        %399 = vmatmul.f32.gmra.mxu0 %v366
        %v400 = vpop.f32.mrf.mxu0
        %v401 = vadd.f32 %v341, %v400
        %402 = vmatmul.f32.gmra.mxu0 %v369
        %v403 = vpop.f32.mrf.mxu0
        %v404 = vadd.f32 %v346, %v403
        %405 = vmatmul.f32.gmra.mxu0 %v372
        %v406 = vpop.f32.mrf.mxu0
        %v407 = vadd.f32 %v351, %v406
        %408 = vmatmul.f32.gmra.mxu0 %v375
        %v409 = vpop.f32.mrf.mxu0
        %v410 = vadd.f32 %v356, %v409
        %411 = vdwg.mxu0
        %412 = vmatpush.msra.mxu0 0.0
        %413 = vmatpush.msra.mxu0 0.0
        %414 = vmatpush.msra.mxu0 0.0
        %415 = vmatpush.msra.mxu0 0.0
        %416 = vmatpush.msra.mxu0 0.0
        %417 = vmatpush.msra.mxu0 0.0
        %418 = vmatpush.msra.mxu0 0.0
        %419 = vmatpush.msra.mxu0 0.0
        %420 = vmatpush.msra.mxu0 0.0
        %421 = vmatpush.msra.mxu0 0.0
        %422 = vmatpush.msra.mxu0 0.0
        %423 = vmatpush.msra.mxu0 0.0
        %424 = vmatpush.msra.mxu0 %v315
        %425 = vmatpush.msra.mxu0 %v313
        %426 = vmatpush.msra.mxu0 %v311
        %427 = vmatpush.msra.mxu0 %v309
        %428 = vmatmul.f32.gmra.mxu0 %v360
        %v429 = vpop.f32.mrf.mxu0
        %v430 = vadd.f32 %v331, %v429
        %431 = vmatmul.f32.gmra.mxu0 %v363
        %v432 = vpop.f32.mrf.mxu0
        %v433 = vadd.f32 %v336, %v432
        %434 = vmatmul.f32.gmra.mxu0 %v366
        %v435 = vpop.f32.mrf.mxu0
        %v436 = vadd.f32 %v341, %v435
        %437 = vmatmul.f32.gmra.mxu0 %v369
        %v438 = vpop.f32.mrf.mxu0
        %v439 = vadd.f32 %v346, %v438
        %440 = vmatmul.f32.gmra.mxu0 %v372
        %v441 = vpop.f32.mrf.mxu0
        %v442 = vadd.f32 %v351, %v441
        %443 = vmatmul.f32.gmra.mxu0 %v375
        %v444 = vpop.f32.mrf.mxu0
        %v445 = vadd.f32 %v356, %v444
        %446 = vdwg.mxu0
        %v447 = vmax.f32 %v395, 0.0
        %v448 = vmax.f32 %v430, 0.0
        %v449 = vmax.f32 %v398, 0.0
        %v450 = vmax.f32 %v433, 0.0
        %v451 = vmax.f32 %v401, 0.0
        %v452 = vmax.f32 %v436, 0.0
        %v453 = vmax.f32 %v404, 0.0
        %v454 = vmax.f32 %v439, 0.0
        %v455 = vld [vmem:[%s3] sm:$0xff]
        %v456 = vld [vmem:[%s4] sm:$0xff]
        %458 = vset.pattern.permute.xlu0 0
        %459 = vperm.xlu0 %458, %v456
        %v460 = vpop.permute.xlu0 %459
        %v463 = vsel %vm358, %v455, 0
        %465 = vmatpush.msra.mxu0 0.0
        %466 = vmatpush.msra.mxu0 0.0
        %467 = vmatpush.msra.mxu0 0.0
        %468 = vmatpush.msra.mxu0 0.0
        %469 = vmatpush.msra.mxu0 0.0
        %470 = vmatpush.msra.mxu0 0.0
        %471 = vmatpush.msra.mxu0 0.0
        %472 = vmatpush.msra.mxu0 0.0
        %473 = vmatpush.msra.mxu0 0.0
        %474 = vmatpush.msra.mxu0 0.0
        %475 = vmatpush.msra.mxu0 0.0
        %476 = vmatpush.msra.mxu0 0.0
        %477 = vmatpush.msra.mxu0 %v453
        %478 = vmatpush.msra.mxu0 %v451
        %479 = vmatpush.msra.mxu0 %v449
        %480 = vmatpush.msra.mxu0 %v447
        %481 = vmatmul.f32.gmra.mxu0 %v463
        %v482 = vpop.f32.mrf.mxu0
        %v483 = vadd.f32 %v460, %v482
        %484 = vdwg.mxu0
        %485 = vmatpush.msra.mxu0 0.0
        %486 = vmatpush.msra.mxu0 0.0
        %487 = vmatpush.msra.mxu0 0.0
        %488 = vmatpush.msra.mxu0 0.0
        %489 = vmatpush.msra.mxu0 0.0
        %490 = vmatpush.msra.mxu0 0.0
        %491 = vmatpush.msra.mxu0 0.0
        %492 = vmatpush.msra.mxu0 0.0
        %493 = vmatpush.msra.mxu0 0.0
        %494 = vmatpush.msra.mxu0 0.0
        %495 = vmatpush.msra.mxu0 0.0
        %496 = vmatpush.msra.mxu0 0.0
        %497 = vmatpush.msra.mxu0 %v454
        %498 = vmatpush.msra.mxu0 %v452
        %499 = vmatpush.msra.mxu0 %v450
        %500 = vmatpush.msra.mxu0 %v448
        %501 = vmatmul.f32.gmra.mxu0 %v463
        %v502 = vpop.f32.mrf.mxu0
        %v503 = vadd.f32 %v460, %v502
        %504 = vdwg.mxu0
        %v505 = vmax.f32 %v483, 0.0
        %v506 = vmax.f32 %v503, 0.0
        %v507 = vld [vmem:[%s5] sm:$0xff]
        %v508 = vld [vmem:[%s6] sm:$0xff]
        %510 = vset.pattern.permute.xlu0 0
        %511 = vperm.xlu0 %510, %v508
        %v512 = vpop.permute.xlu0 %511
        %vm514 = vcmask 64512
        %v516 = vsel %vm514, %v507, 0
        %518 = vmatpush.msra.mxu0 0.0
        %519 = vmatpush.msra.mxu0 0.0
        %520 = vmatpush.msra.mxu0 0.0
        %521 = vmatpush.msra.mxu0 0.0
        %522 = vmatpush.msra.mxu0 0.0
        %523 = vmatpush.msra.mxu0 0.0
        %524 = vmatpush.msra.mxu0 0.0
        %525 = vmatpush.msra.mxu0 0.0
        %526 = vmatpush.msra.mxu0 0.0
        %527 = vmatpush.msra.mxu0 0.0
        %528 = vmatpush.msra.mxu0 0.0
        %529 = vmatpush.msra.mxu0 0.0
        %530 = vmatpush.msra.mxu0 0.0
        %531 = vmatpush.msra.mxu0 0.0
        %532 = vmatpush.msra.mxu0 0.0
        %533 = vmatpush.msra.mxu0 %v505
        %534 = vmatmul.f32.gmra.mxu0 %v516
        %v535 = vpop.f32.mrf.mxu0
        %v536 = vadd.f32 %v512, %v535
        %537 = vdwg.mxu0
        %538 = vmatpush.msra.mxu0 0.0
        %539 = vmatpush.msra.mxu0 0.0
        %540 = vmatpush.msra.mxu0 0.0
        %541 = vmatpush.msra.mxu0 0.0
        %542 = vmatpush.msra.mxu0 0.0
        %543 = vmatpush.msra.mxu0 0.0
        %544 = vmatpush.msra.mxu0 0.0
        %545 = vmatpush.msra.mxu0 0.0
        %546 = vmatpush.msra.mxu0 0.0
        %547 = vmatpush.msra.mxu0 0.0
        %548 = vmatpush.msra.mxu0 0.0
        %549 = vmatpush.msra.mxu0 0.0
        %550 = vmatpush.msra.mxu0 0.0
        %551 = vmatpush.msra.mxu0 0.0
        %552 = vmatpush.msra.mxu0 0.0
        %553 = vmatpush.msra.mxu0 %v506
        %554 = vmatmul.f32.gmra.mxu0 %v516
        %v555 = vpop.f32.mrf.mxu0
        %v556 = vadd.f32 %v512, %v555
        %557 = vdwg.mxu0
        %v558 = vmax.f32 %v536, 0.0
        %v559 = vmax.f32 %v556, 0.0
        %v560 = vmul.f32 %v558, %v407
        %v561 = vmul.f32 %v559, %v442
        %v562 = vrot.slane %v560, 4
        %v563 = vadd.f32 %v560, %v562
        %v564 = vrot.slane %v563, 2
        %v565 = vadd.f32 %v563, %v564
        %v566 = vrot.slane %v565, 1
        %v567 = vadd.f32 %v565, %v566
        %v568 = vrot.slane %v561, 4
        %v569 = vadd.f32 %v561, %v568
        %v570 = vrot.slane %v569, 2
        %v571 = vadd.f32 %v569, %v570
        %v572 = vrot.slane %v571, 1
        %v573 = vadd.f32 %v571, %v572
        %v574 = vadd.f32 %v567, %v410
        %v575 = vadd.f32 %v573, %v445
        %v578 = vrot.slane %v575, 7
        %vm579 = vcmask 1040384
        %v580 = vsel %vm579, %v574, %v578
        %v582 = vlaneseq
        %vm583 = vcmp.ge.s32.totalorder %v582, 0
        %vm584 = vcmp.lt.s32.totalorder %v582, 256
        %vm585 = vmand %vm583, %vm584
        %586 = vst.msk [vmem:[%s296] sm:$0x3] %vm585, %v580
        %s587 = sand.u32 %s197, 1
        %s588 = scalar_lea.sflag [#allocation3], %s587
        %s589 = sand.u32 %s197, 1
        %s590 = smul.addr %s589, 2
        %s591 = scalar_lea.vmem [#allocation2], %s590
        // Predicated region
        $region49: #{tpu_custom_call.1} parent=47 // pred_check
          %p592 = pneg %p207
        $region50: #{tpu_custom_call.1} parent=47 // pred_check_branch
          %594 = sbr.rel (%p592) target = $region52
        $region51: #{tpu_custom_call.1} parent=47 // pred_region
          %s595 = smul.u32 2, %s26
          %597 = vsyncadd %s588, 0
          %s598 = smul.addr %s25, 2
          %s599 = sadd.s32 %s595, %s598
          %s600 = scalar_lea.hbm %s7, %s599
          %s602 = sshll.u32 %s591, 4
          %s603 = int_to_ptr.vmem [resolvable:$true] %s602
          %s604 = sshll.u32 %s600, 4
          %s605 = int_to_ptr.hbm [resolvable:$true] %s604
          %607 = dma.vmem_to_hbm [thread:$0]  %s603, 32, %s605, %s588
        $region52: #{tpu_custom_call.1} parent=47 // pred_fallthru
          _
      $region48: #{tpu_custom_call.1} parent=5 // pred_fallthru
        _
      %p608 = scmp.le.s32.totalorder 2, %s16
      // Predicated region
      $region53: #{tpu_custom_call.1} parent=5 // pred_check
        %p609 = pneg %p608
      $region54: #{tpu_custom_call.1} parent=5 // pred_check_branch
        %611 = sbr.rel (%p609) target = $region56
      $region55: #{tpu_custom_call.1} parent=5 // pred_region
        %s612 = ssub.s32 %s16, 2
        // Predicated region
        $region57: #{tpu_custom_call.1} parent=55 // pred_check
          %p613 = pneg %p213
        $region58: #{tpu_custom_call.1} parent=55 // pred_check_branch
          %615 = sbr.rel (%p613) target = $region60
        $region59: #{tpu_custom_call.1} parent=55 // pred_region
          %s616 = sand.u32 %s198, 1
          %s617 = scalar_lea.sflag [#allocation3], %s616
          %s618 = sand.u32 %s198, 1
          %s619 = smul.addr %s618, 2
          %s620 = scalar_lea.vmem [#allocation2], %s619
          %622 = dma.done %s617, 32
        $region60: #{tpu_custom_call.1} parent=55 // pred_fallthru
          _
      $region56: #{tpu_custom_call.1} parent=5 // pred_fallthru
        _
    $region6: #{tpu_custom_call.1} parent=1 // loop_footer
      %s20 = sadd.s32 1, %s16
    $region7: #{tpu_custom_call.1} parent=1 // loop_footer_branch
      %15 = sbr.rel target = $region3
    $region8: #{tpu_custom_call.1} parent=1 // loop_exit
      _
    %623 = vsyncpa [#allocation3], 1
    %s624 = scalar_lea.sflag [#allocation3], 1
    %625 = vsyncpa %s624, 1

</llo_original>
